<compile_context>
chip_gen: v7x
topology: tpu7x:2x2x1
jax: 0.10.0
libtpu: 0.0.40
codegen_flags: <defaults>
</compile_context>

<pallas_src>
import functools

import jax
import jax.numpy as jnp
from jax import lax
from jax.experimental import pallas as pl
from jax.experimental.pallas import tpu as pltpu


def _spatial_gather_kernel(feats_ref, logits_ref, out_ref,
                           m_ref, l_ref, acc_ref,
                           *, scale, hw_total, hw_tile, needs_mask, two_pass):
    """One (batch, C-tile, HW-tile) grid step.

    Refs (batch and C-tile grid dims squeezed away):
      feats_ref  : (tC, tHW)                       -- input dtype, fed to MXU
      logits_ref : (K, HW) if two_pass else (K, tHW)
      out_ref    : (K, tC)                         -- lane-dense store
    Scratch (f32): m_ref (K,1), l_ref (K,1), acc_ref (K,tC).
    """
    h = pl.program_id(2)
    n_h = pl.num_programs(2)
    feats = feats_ref[...]                              # keep input dtype

    def _accumulate(p, f):
        # (K, tC) += p (K, tHW) contracted with f (tC, tHW) over HW.  Both
        # operands contract their last (lane) dim -> MXU transposed-weight
        # push (flash-attention q.k^T pattern); no XLU transpose of `f`.
        return lax.dot_general(
            p.astype(f.dtype), f,
            dimension_numbers=(((1,), (1,)), ((), ())),
            preferred_element_type=jnp.float32)

    if two_pass:
        # Exact two-pass softmax: logits stay VMEM-resident for the whole HW
        # sweep; the global row max is computed once, and the steady-state
        # loop is just exp + matmul-accumulate (no rescale of the accumulator).
        @pl.when(h == 0)
        def _init():
            # max computed in the input dtype (exact), scaled in f32 -> avoids
            # materializing a full (K, HW) f32 temporary.
            row_max = jnp.max(logits_ref[...], axis=-1, keepdims=True)
            m_ref[...] = scale * row_max.astype(jnp.float32)
            l_ref[...] = jnp.zeros(l_ref.shape, jnp.float32)
            acc_ref[...] = jnp.zeros(acc_ref.shape, jnp.float32)

        start = pl.multiple_of(h * hw_tile, hw_tile)
        s = scale * logits_ref[:, pl.ds(start, hw_tile)].astype(jnp.float32)
        p = jnp.exp(s - m_ref[...])                                   # (K, tHW)
        l_ref[...] += jnp.sum(p, axis=-1, keepdims=True)
        acc_ref[...] += _accumulate(p, feats)
    else:
        # Online-softmax fallback (ragged HW and/or logits too big for VMEM).
        @pl.when(h == 0)
        def _init():
            m_ref[...] = jnp.full(m_ref.shape, -jnp.inf, jnp.float32)
            l_ref[...] = jnp.zeros(l_ref.shape, jnp.float32)
            acc_ref[...] = jnp.zeros(acc_ref.shape, jnp.float32)

        def _update(s_blk, f_blk):
            m_prev = m_ref[...]
            m_new = jnp.maximum(m_prev, jnp.max(s_blk, axis=-1, keepdims=True))
            alpha = jnp.exp(m_prev - m_new)
            p = jnp.exp(s_blk - m_new)
            l_ref[...] = alpha * l_ref[...] + jnp.sum(p, axis=-1, keepdims=True)
            acc_ref[...] = alpha * acc_ref[...] + _accumulate(p, f_blk)
            m_ref[...] = m_new

        s = scale * logits_ref[...].astype(jnp.float32)               # (K, tHW)

        if needs_mask:
            # Only the last HW tile is ragged: gate the (tC x tHW) padding
            # mask so its VPU cost is not paid on every steady-state step.
            last = n_h - 1

            @pl.when(h != last)
            def _steady():
                _update(s, feats)

            @pl.when(h == last)
            def _ragged():
                hw_start = h * hw_tile
                col_k = hw_start + lax.broadcasted_iota(jnp.int32, s.shape, 1)
                s_m = jnp.where(col_k < hw_total, s, jnp.float32(-jnp.inf))
                col_c = hw_start + lax.broadcasted_iota(jnp.int32, feats.shape, 1)
                f_m = jnp.where(col_c < hw_total, feats, jnp.zeros_like(feats))
                _update(s_m, f_m)
        else:
            _update(s, feats)

    @pl.when(h == n_h - 1)
    def _finalize():
        # Approximate reciprocal runs on the EUP slot (effectively free); the
        # f32 accumulation makes the tiny (K,1) precision loss irrelevant.
        inv_l = pl.reciprocal(l_ref[...], approx=True)
        out_ref[...] = (acc_ref[...] * inv_l).astype(out_ref.dtype)


def _pick_hw_tile(hw, target):
    """Largest legal HW tile <= target; prefer a divisor of HW (no ragged tile)."""
    target = max(128, (int(target) // 128) * 128)
    if hw <= target:
        return hw                         # full dim is always a legal block size
    t = target
    while t >= 128:
        if hw % t == 0:
            return t                      # multiple-of-128 divisor -> no masking
        t -= 128
    return target                         # ragged; last tile masked in-kernel


def _pick_c_tile(c, target, batch):
    """C tile: multiple of 128 (lane-dense output); >=2 parallel blocks for v7x."""
    if c % 128 != 0:
        return c                          # full-C fallback (block == full dim)
    t = min(c, max(128, (int(target) // 128) * 128))
    if batch * pl.cdiv(c, t) < 2 and c >= 256:
        # Megacore occupancy: split C so both v7x TensorCores get a block.
        t = pl.cdiv(c // 2, 128) * 128
    return t


def spatial_gather(feats, prev_logits, scale=1.0, hw_tile=None, c_tile=512):
    """feats: (B, C, H, W), prev_logits: (B, K, H, W) -> (B, C, K, 1)."""
    assert scale > 0.0
    B, C, Hf, Wf = feats.shape
    Bl, K, H, W = prev_logits.shape
    assert B == Bl and Hf == H and Wf == W
    HW = H * W

    feats_flat = feats.reshape(B, C, HW)
    logits_flat = prev_logits.reshape(B, K, HW)
    f_isz = feats_flat.dtype.itemsize
    l_isz = logits_flat.dtype.itemsize

    if hw_tile is None:
        # Bigger tiles amortize the per-grid-step overhead; sized so the
        # double-buffered feats tile is <= ~16 MiB (fits v7x's 64 MiB VMEM).
        hw_tile = 8192 if f_isz <= 2 else 4096

    t_hw = _pick_hw_tile(HW, hw_tile)
    t_c = _pick_c_tile(C, c_tile, B)
    n_hw = pl.cdiv(HW, t_hw)
    n_c = pl.cdiv(C, t_c)
    needs_mask = (HW % t_hw) != 0
    # Two-pass (resident-logits) softmax only when the (K, HW) logits block is
    # small enough to sit double-buffered in VMEM and tiles divide HW evenly.
    two_pass = (not needs_mask) and (2 * K * HW * l_isz <= (8 << 20))

    kernel = functools.partial(
        _spatial_gather_kernel,
        scale=float(scale), hw_total=HW, hw_tile=t_hw,
        needs_mask=needs_mask, two_pass=two_pass)

    if two_pass:
        logits_spec = pl.BlockSpec((pl.Squeezed(), K, HW), lambda b, c, h: (b, 0, 0))
        logits_vmem = 2 * K * HW * l_isz
    else:
        logits_spec = pl.BlockSpec((pl.Squeezed(), K, t_hw), lambda b, c, h: (b, 0, h))
        logits_vmem = 2 * K * t_hw * l_isz

    # Explicit VMEM budget: double-buffered feats + logits + output + scratch,
    # plus headroom.  Stays well under the v7x 64 MiB physical VMEM.
    vmem_needed = (2 * t_c * t_hw * f_isz + logits_vmem
                   + 2 * K * t_c * f_isz + 4 * K * (t_c + 2 * 128))
    vmem_limit = max(32 << 20, int(vmem_needed) + (8 << 20))

    cost = pl.CostEstimate(
        flops=2 * B * C * K * HW,
        transcendentals=B * n_c * K * n_hw * t_hw,
        bytes_accessed=(B * C * HW * f_isz
                        + B * n_c * K * HW * l_isz
                        + B * K * C * f_isz),
    )

    out_kc = pl.pallas_call(
        kernel,
        out_shape=jax.ShapeDtypeStruct((B, K, C), feats.dtype),
        grid_spec=pltpu.PrefetchScalarGridSpec(
            num_scalar_prefetch=0,
            # batch and C-tile are "parallel" (megacore sharding); HW carries
            # the softmax/matmul accumulator -> last, "arbitrary".
            grid=(B, n_c, n_hw),
            in_specs=[
                pl.BlockSpec((pl.Squeezed(), t_c, t_hw), lambda b, c, h: (b, c, h)),
                logits_spec,
            ],
            out_specs=pl.BlockSpec((pl.Squeezed(), K, t_c), lambda b, c, h: (b, 0, c)),
            scratch_shapes=[
                pltpu.VMEM((K, 1), jnp.float32),    # row max (two-pass: global max)
                pltpu.VMEM((K, 1), jnp.float32),    # softmax denominator
                pltpu.VMEM((K, t_c), jnp.float32),  # (K, C-tile) f32 accumulator
            ],
        ),
        compiler_params=pltpu.CompilerParams(
            dimension_semantics=("parallel", "parallel", "arbitrary"),
            vmem_limit_bytes=vmem_limit,
        ),
        cost_estimate=cost,
    )(feats_flat, logits_flat)

    # (B, K, C) -> (B, C, K, 1): tiny relayout done outside the kernel.
    return jnp.transpose(out_kc, (0, 2, 1))[..., None]


def _reference(feats, prev_logits, scale=1.0):
    B, K, H, W = prev_logits.shape
    C = feats.shape[1]
    logits = prev_logits.reshape(B, K, -1)
    probs = jax.nn.softmax(scale * logits.astype(jnp.float32), axis=2)
    f = jnp.transpose(feats.reshape(B, C, -1).astype(jnp.float32), (0, 2, 1))
    out = jnp.einsum("bkn,bnc->bkc", probs, f)              # (B, K, C)
    return jnp.transpose(out, (0, 2, 1))[..., None].astype(feats.dtype)


if __name__ == "__main__":
    key = jax.random.PRNGKey(0)
    k1, k2, k3, k4, k5, k6 = jax.random.split(key, 6)

    # Check 1: HW divisible by the tile -> two-pass resident-logits path with
    # two HW reduction steps (no masking).
    B, C, K, H, W = 2, 4, 8, 16, 16
    feats = jax.random.normal(k1, (B, C, H, W), dtype=jnp.float32)
    prev_logits = jax.random.normal(k2, (B, K, H, W), dtype=jnp.float32)
    out = jax.block_until_ready(spatial_gather(feats, prev_logits, scale=1.0, hw_tile=128))
    ref = _reference(feats, prev_logits, scale=1.0)
    assert out.shape == (B, C, K, 1), out.shape
    assert jnp.allclose(out, ref, atol=2e-3, rtol=2e-3), "mismatch (check 1: two-pass)"

    # Check 2: ragged HW (16*20 = 320 = 2*128 + 64) -> online-softmax fallback
    # with the pl.when-gated padded-tile mask, non-unit scale.
    H2, W2 = 16, 20
    feats2 = jax.random.normal(k3, (B, C, H2, W2), dtype=jnp.float32)
    prev_logits2 = jax.random.normal(k4, (B, K, H2, W2), dtype=jnp.float32)
    out2 = jax.block_until_ready(spatial_gather(feats2, prev_logits2, scale=2.0, hw_tile=128))
    ref2 = _reference(feats2, prev_logits2, scale=2.0)
    assert out2.shape == (B, C, K, 1), out2.shape
    assert jnp.allclose(out2, ref2, atol=2e-3, rtol=2e-3), "mismatch (check 2: online/masked)"

    # Check 3: bf16 feats with B=1 -> exercises the megacore C-tile split
    # (C=256 -> two 128-wide parallel C tiles) and the bf16 MXU path (f32 acc).
    B3, C3, H3, W3 = 1, 256, 16, 16
    feats3 = jax.random.normal(k5, (B3, C3, H3, W3), dtype=jnp.bfloat16)
    prev_logits3 = jax.random.normal(k6, (B3, K, H3, W3), dtype=jnp.float32)
    out3 = jax.block_until_ready(spatial_gather(feats3, prev_logits3, scale=1.0))
    ref3 = _reference(feats3, prev_logits3, scale=1.0)
    assert out3.shape == (B3, C3, K, 1), out3.shape
    assert jnp.allclose(out3.astype(jnp.float32), ref3.astype(jnp.float32),
                        atol=3e-2, rtol=3e-2), "mismatch (check 3: bf16)"

    print("KERNEL_OK")
</pallas_src>

<mosaic_0001>
module attributes {stable_mosaic.version = 11 : i64} {
  func.func @_spatial_gather_kernel(%arg0: i32, %arg1: i32, %arg2: i32, %arg3: memref<1x4x128xf32, #tpu.memory_space<vmem>>, %arg4: memref<1x8x256xf32, #tpu.memory_space<vmem>>, %arg5: memref<1x8x4xf32, #tpu.memory_space<vmem>>, %arg6: memref<8x1xf32, #tpu.memory_space<vmem>>, %arg7: memref<8x1xf32, #tpu.memory_space<vmem>>, %arg8: memref<8x4xf32, #tpu.memory_space<vmem>>) attributes {dimension_semantics = [#tpu.dimension_semantics<parallel>, #tpu.dimension_semantics<parallel>, #tpu.dimension_semantics<arbitrary>], iteration_bounds = array<i64: 2, 1, 2>, scalar_prefetch = 0 : i64, scratch_operands = 3 : i64, tpu.core_type = #tpu.core_type<tc>, window_params = [{transform_indices = @transform_0, window_bounds = array<i64: 1, 4, 128>}, {transform_indices = @transform_1, window_bounds = array<i64: 1, 8, 256>}, {transform_indices = @transform_2, window_bounds = array<i64: 1, 8, 4>}]} {
    %c0 = arith.constant 0 : index
    %c0_0 = arith.constant 0 : index
    %c0_1 = arith.constant 0 : index
    %0 = vector.load %arg3[%c0, %c0_0, %c0_1] : memref<1x4x128xf32, #tpu.memory_space<vmem>>, vector<1x4x128xf32>
    %1 = vector.shape_cast %0 : vector<1x4x128xf32> to vector<4x128xf32>
    %c0_i32 = arith.constant 0 : i32
    %2 = arith.cmpi eq, %arg2, %c0_i32 : i32
    %3 = arith.extui %2 : i1 to i32
    %c0_i32_2 = arith.constant 0 : i32
    %4 = arith.cmpi ne, %3, %c0_i32_2 : i32
    scf.if %4 {
      %c0_18 = arith.constant 0 : index
      %c0_19 = arith.constant 0 : index
      %c0_20 = arith.constant 0 : index
      %28 = vector.load %arg4[%c0_18, %c0_19, %c0_20] : memref<1x8x256xf32, #tpu.memory_space<vmem>>, vector<1x8x256xf32>
      %29 = vector.shape_cast %28 : vector<1x8x256xf32> to vector<8x256xf32>
      %cst_21 = arith.constant dense<0xFF800000> : vector<8xf32>
      %30 = vector.multi_reduction <maximumf>, %29, %cst_21 [1] : vector<8x256xf32> to vector<8xf32>
      %31 = vector.shape_cast %30 : vector<8xf32> to vector<8x1xf32>
      %cst_22 = arith.constant 1.000000e+00 : f32
      %32 = vector.broadcast %cst_22 : f32 to vector<8x1xf32>
      %33 = arith.mulf %32, %31 : vector<8x1xf32>
      %c0_23 = arith.constant 0 : index
      %c0_24 = arith.constant 0 : index
      %34 = vector.load %arg6[%c0_23, %c0_24] : memref<8x1xf32, #tpu.memory_space<vmem>>, vector<8x1xf32>
      tpu.vector_store %arg6[%c0_23, %c0_24], %33 {strides = array<i32>} : memref<8x1xf32, #tpu.memory_space<vmem>>, vector<8x1xf32>,
      %cst_25 = arith.constant 0.000000e+00 : f32
      %35 = vector.broadcast %cst_25 : f32 to vector<8x1xf32>
      %c0_26 = arith.constant 0 : index
      %c0_27 = arith.constant 0 : index
      %36 = vector.load %arg7[%c0_26, %c0_27] : memref<8x1xf32, #tpu.memory_space<vmem>>, vector<8x1xf32>
      tpu.vector_store %arg7[%c0_26, %c0_27], %35 {strides = array<i32>} : memref<8x1xf32, #tpu.memory_space<vmem>>, vector<8x1xf32>,
      %cst_28 = arith.constant 0.000000e+00 : f32
      %37 = vector.broadcast %cst_28 : f32 to vector<8x4xf32>
      %c0_29 = arith.constant 0 : index
      %c0_30 = arith.constant 0 : index
      %38 = vector.load %arg8[%c0_29, %c0_30] : memref<8x4xf32, #tpu.memory_space<vmem>>, vector<8x4xf32>
      tpu.vector_store %arg8[%c0_29, %c0_30], %37 {strides = array<i32>} : memref<8x4xf32, #tpu.memory_space<vmem>>, vector<8x4xf32>,
    } else {
    }
    %c128_i32 = arith.constant 128 : i32
    %5 = arith.muli %arg2, %c128_i32 : i32
    %6 = tpu.assume_multiple %5, 128 : i32
    %c0_3 = arith.constant 0 : index
    %c0_4 = arith.constant 0 : index
    %7 = arith.index_cast %6 : i32 to index
    %8 = vector.load %arg4[%c0_3, %c0_4, %7] : memref<1x8x256xf32, #tpu.memory_space<vmem>>, vector<1x8x128xf32>
    %9 = vector.shape_cast %8 : vector<1x8x128xf32> to vector<8x128xf32>
    %cst = arith.constant 1.000000e+00 : f32
    %10 = vector.broadcast %cst : f32 to vector<8x128xf32>
    %11 = arith.mulf %10, %9 : vector<8x128xf32>
    %c0_5 = arith.constant 0 : index
    %c0_6 = arith.constant 0 : index
    %12 = vector.load %arg6[%c0_5, %c0_6] : memref<8x1xf32, #tpu.memory_space<vmem>>, vector<8x1xf32>
    %13 = vector.broadcast %12 : vector<8x1xf32> to vector<8x128xf32>
    %14 = arith.subf %11, %13 : vector<8x128xf32>
    %15 = math.exp %14 : vector<8x128xf32>
    %c0_7 = arith.constant 0 : index
    %c0_8 = arith.constant 0 : index
    %16 = vector.load %arg7[%c0_7, %c0_8] : memref<8x1xf32, #tpu.memory_space<vmem>>, vector<8x1xf32>
    %cst_9 = arith.constant dense<0.000000e+00> : vector<8xf32>
    %17 = vector.multi_reduction <add>, %15, %cst_9 [1] : vector<8x128xf32> to vector<8xf32>
    %18 = vector.shape_cast %17 : vector<8xf32> to vector<8x1xf32>
    %19 = arith.addf %16, %18 : vector<8x1xf32>
    %c0_10 = arith.constant 0 : index
    %c0_11 = arith.constant 0 : index
    %20 = vector.load %arg7[%c0_10, %c0_11] : memref<8x1xf32, #tpu.memory_space<vmem>>, vector<8x1xf32>
    tpu.vector_store %arg7[%c0_10, %c0_11], %19 {strides = array<i32>} : memref<8x1xf32, #tpu.memory_space<vmem>>, vector<8x1xf32>,
    %c0_12 = arith.constant 0 : index
    %c0_13 = arith.constant 0 : index
    %21 = vector.load %arg8[%c0_12, %c0_13] : memref<8x4xf32, #tpu.memory_space<vmem>>, vector<8x4xf32>
    %cst_14 = arith.constant dense<0.000000e+00> : vector<8x4xf32>
    %22 = tpu.matmul %15, %1, %cst_14 {dimension_numbers = #tpu.dot_dimension_numbers<[1], [1], [0], [0], [0, 0, 1, 0], [], []>} : vector<8x128xf32>, vector<4x128xf32>, vector<8x4xf32> -> vector<8x4xf32>
    %23 = arith.addf %21, %22 : vector<8x4xf32>
    %c0_15 = arith.constant 0 : index
    %c0_16 = arith.constant 0 : index
    %24 = vector.load %arg8[%c0_15, %c0_16] : memref<8x4xf32, #tpu.memory_space<vmem>>, vector<8x4xf32>
    tpu.vector_store %arg8[%c0_15, %c0_16], %23 {strides = array<i32>} : memref<8x4xf32, #tpu.memory_space<vmem>>, vector<8x4xf32>,
    %c1_i32 = arith.constant 1 : i32
    %25 = arith.cmpi eq, %arg2, %c1_i32 : i32
    %26 = arith.extui %25 : i1 to i32
    %c0_i32_17 = arith.constant 0 : i32
    %27 = arith.cmpi ne, %26, %c0_i32_17 : i32
    scf.if %27 {
      %c0_18 = arith.constant 0 : index
      %c0_19 = arith.constant 0 : index
      %28 = vector.load %arg7[%c0_18, %c0_19] : memref<8x1xf32, #tpu.memory_space<vmem>>, vector<8x1xf32>
      %29 = tpu.reciprocal %28 {approx = true} : vector<8x1xf32> -> vector<8x1xf32>
      %c0_20 = arith.constant 0 : index
      %c0_21 = arith.constant 0 : index
      %30 = vector.load %arg8[%c0_20, %c0_21] : memref<8x4xf32, #tpu.memory_space<vmem>>, vector<8x4xf32>
      %31 = vector.broadcast %29 : vector<8x1xf32> to vector<8x4xf32>
      %32 = arith.mulf %30, %31 : vector<8x4xf32>
      %c0_22 = arith.constant 0 : index
      %c0_23 = arith.constant 0 : index
      %c0_24 = arith.constant 0 : index
      %33 = vector.load %arg5[%c0_22, %c0_23, %c0_24] : memref<1x8x4xf32, #tpu.memory_space<vmem>>, vector<1x8x4xf32>
      %34 = vector.shape_cast %33 : vector<1x8x4xf32> to vector<8x4xf32>
      %35 = vector.shape_cast %32 : vector<8x4xf32> to vector<1x8x4xf32>
      tpu.vector_store %arg5[%c0_22, %c0_23, %c0_24], %35 {strides = array<i32>} : memref<1x8x4xf32, #tpu.memory_space<vmem>>, vector<1x8x4xf32>,
    } else {
    }
    return
  }
  func.func @transform_0(%arg0: i32, %arg1: i32, %arg2: i32) -> (i32, i32, i32) {
    %c0_i32 = arith.constant 0 : i32
    return %arg0, %arg1, %arg2 : i32, i32, i32
  }
  func.func @transform_1(%arg0: i32, %arg1: i32, %arg2: i32) -> (i32, i32, i32) {
    %c0_i32 = arith.constant 0 : i32
    %c0_i32_0 = arith.constant 0 : i32
    %c0_i32_1 = arith.constant 0 : i32
    return %arg0, %c0_i32, %c0_i32_0 : i32, i32, i32
  }
  func.func @transform_2(%arg0: i32, %arg1: i32, %arg2: i32) -> (i32, i32, i32) {
    %c0_i32 = arith.constant 0 : i32
    %c0_i32_0 = arith.constant 0 : i32
    return %arg0, %c0_i32, %arg1 : i32, i32, i32
  }
}

</mosaic_0001>

<llo_original>
// kernel: tpu_custom_call.1
$region0: #{tpu_custom_call.1}
  #allocation0 [shape = 'u32[]', space=smem, size = 0x4, offset = 0x4, fixed_abs, tag = 'smem constant byte address 0x4 - core index']
  #allocation1 [shape = 'u32[144,128]{1,0:T(1,128)}', space=vmem, size = 0x12000, scoped, tag = 'internal scratch']
  #allocation2 [shape = 'f32[8,1]{1,0:T(8,128)}', space=vmem, size = 0x1000, scoped, tag = 'scratch operand']
  #allocation3 [shape = 'f32[8,1]{1,0:T(8,128)}', space=vmem, size = 0x1000, scoped, tag = 'scratch operand']
  #allocation4 [shape = 'f32[8,4]{1,0:T(8,128)}', space=vmem, size = 0x1000, scoped, tag = 'scratch operand']
  %s0 = inlined_call_operand.hbm [shape: f32[2,4,256], index: 0, kind: input, shape index: {}]
  %s1 = inlined_call_operand.hbm [shape: f32[2,8,256], index: 1, kind: input, shape index: {}]
  %s2 = inlined_call_operand.vmem [shape: f32[2,8,4], index: 2, kind: output, shape index: {}]
  %s3 = sld [smem:[#allocation0]]
  $region57: #{tpu_custom_call.1} parent=0
    _
  %s5 = ssub.s32 1, %s3
  %s6 = scalar_select 0, %s5, %s3
  $region1: #{tpu_custom_call.1} parent=0
    #allocation5 [shape = 'u8[4096]{0}', space=vmem, size = 0x1000, scoped, tag = 'input window, operand 0']
    #allocation6 [shape = 's32[2]{0}', space=sflag, size = 0x8, scoped, tag = 'scoped memory for tpu_custom_call.1']
    #allocation7 [shape = 'u8[16384]{0}', space=vmem, size = 0x4000, scoped, tag = 'input window, operand 1']
    #allocation8 [shape = 's32[2]{0}', space=sflag, size = 0x8, scoped, tag = 'scoped memory for tpu_custom_call.1']
    %7 = vsyncpa [#allocation6], 0
    %s8 = scalar_lea.sflag [#allocation6], 1
    %9 = vsyncpa %s8, 0
    %10 = vsyncpa [#allocation8], 0
    %s11 = scalar_lea.sflag [#allocation8], 1
    %12 = vsyncpa %s11, 0
    loop: start=0, step=1, limit=6
    $region2: #{tpu_custom_call.1} parent=1 // loop_pre_header
      _
    $region3: #{tpu_custom_call.1} parent=1 // loop_header
      %s14 = sphi 0, %s18
      %p15 = scmp.ge.s32.totalorder %s14, 6
      %s21 = sphi 0, %s40
      %s22 = sphi 0, %s36
      %s23 = sphi 0, %s32
      %s24 = sphi 0, %s21
      %s25 = sphi 0, %s22
      %s26 = sphi 0, %s23
      %s27 = sphi 0, %s24
      %s28 = sphi 0, %s25
      %s29 = sphi 0, %s26
      %s47 = sphi 0, %s49
      %s50 = sphi 0, %s47
      %s51 = sphi 0, %s50
      %s67 = sphi 0, %s51
      %s73 = sphi 0, %s75
      %s76 = sphi 0, %s73
      %s77 = sphi 0, %s76
      %s93 = sphi 0, %s77
      %s101 = sphi 0, %s103
      %s104 = sphi 0, %s101
      %s105 = sphi 0, %s104
      %s121 = sphi 0, %s105
    $region4: #{tpu_custom_call.1} parent=1 // loop_header_branch
      %17 = sbr.rel (%p15) target = $region8
    $region5: #{tpu_custom_call.1} parent=1 // loop_body
      %s19 = ssub.s32 %s14, 1
      %s20 = ssub.s32 %s14, 2
      %s30 = sadd.s32 1, %s23
      %p31 = scmp.ge.s32.totalorder %s30, 2
      %s32 = scalar_select %p31, 0, %s30
      %s33 = sadd.s32 1, %s22
      %s34 = scalar_select %p31, %s33, %s22
      %p35 = scmp.ge.s32.totalorder %s34, 1
      %s36 = scalar_select %p35, 0, %s34
      %s37 = sadd.s32 1, %s21
      %s38 = scalar_select %p35, %s37, %s21
      %p39 = scmp.ge.s32.totalorder %s38, 2
      %s40 = scalar_select %p39, 0, %s38
      %s41 = ssub.s32 %s21, %s40
      %s42 = ssub.s32 %s22, %s36
      %s43 = sor.u32 %s41, %s42
      %s44 = ssub.s32 %s23, %s32
      %s45 = sor.u32 %s43, %s44
      %p46 = scmp.eq.s32.totalorder %s45, 0
      %s48 = sadd.s32 %s47, 1
      %s49 = scalar_select %p46, %s47, %s48
      %p52 = pneg %p46
      %p53 = scmp.eq.s32.totalorder %s14, 3
      %p54 = por %p52, %p53
      %p55 = scmp.ne.s32.totalorder %s47, %s50
      %p56 = scmp.eq.s32.totalorder %s14, 0
      %p57 = por %p55, %p56
      %p58 = scmp.ne.s32.totalorder %s47, %s50
      %p59 = scmp.eq.s32.totalorder %s19, 3
      %p60 = por %p58, %p59
      %p61 = scmp.ne.s32.totalorder %s50, %s51
      %p62 = scmp.eq.s32.totalorder %s19, 0
      %p63 = por %p61, %p62
      %p64 = scmp.ne.s32.totalorder %s50, %s51
      %p65 = scmp.eq.s32.totalorder %s20, 3
      %p66 = por %p64, %p65
      %p68 = scmp.ne.s32.totalorder %s51, %s67
      %p69 = scmp.eq.s32.totalorder %s20, 0
      %p70 = por %p68, %p69
      %s71 = ssub.s32 %s21, %s40
      %p72 = scmp.eq.s32.totalorder %s71, 0
      %s74 = sadd.s32 %s73, 1
      %s75 = scalar_select %p72, %s73, %s74
      %p78 = pneg %p72
      %p79 = scmp.eq.s32.totalorder %s14, 3
      %p80 = por %p78, %p79
      %p81 = scmp.ne.s32.totalorder %s73, %s76
      %p82 = scmp.eq.s32.totalorder %s14, 0
      %p83 = por %p81, %p82
      %p84 = scmp.ne.s32.totalorder %s73, %s76
      %p85 = scmp.eq.s32.totalorder %s19, 3
      %p86 = por %p84, %p85
      %p87 = scmp.ne.s32.totalorder %s76, %s77
      %p88 = scmp.eq.s32.totalorder %s19, 0
      %p89 = por %p87, %p88
      %p90 = scmp.ne.s32.totalorder %s76, %s77
      %p91 = scmp.eq.s32.totalorder %s20, 3
      %p92 = por %p90, %p91
      %p94 = scmp.ne.s32.totalorder %s77, %s93
      %p95 = scmp.eq.s32.totalorder %s20, 0
      %p96 = por %p94, %p95
      %s97 = ssub.s32 %s21, %s40
      %s98 = ssub.s32 %s22, %s36
      %s99 = sor.u32 %s97, %s98
      %p100 = scmp.eq.s32.totalorder %s99, 0
      %s102 = sadd.s32 %s101, 1
      %s103 = scalar_select %p100, %s101, %s102
      %p106 = pneg %p100
      %p107 = scmp.eq.s32.totalorder %s14, 3
      %p108 = por %p106, %p107
      %p109 = scmp.ne.s32.totalorder %s101, %s104
      %p110 = scmp.eq.s32.totalorder %s14, 0
      %p111 = por %p109, %p110
      %p112 = scmp.ne.s32.totalorder %s101, %s104
      %p113 = scmp.eq.s32.totalorder %s19, 3
      %p114 = por %p112, %p113
      %p115 = scmp.ne.s32.totalorder %s104, %s105
      %p116 = scmp.eq.s32.totalorder %s19, 0
      %p117 = por %p115, %p116
      %p118 = scmp.ne.s32.totalorder %s104, %s105
      %p119 = scmp.eq.s32.totalorder %s20, 3
      %p120 = por %p118, %p119
      %p122 = scmp.ne.s32.totalorder %s105, %s121
      %p123 = scmp.eq.s32.totalorder %s20, 0
      %p124 = por %p122, %p123
      %p125 = scmp.le.s32.totalorder 1, %s14
      %p126 = scmp.lt.s32.totalorder %s14, 5
      %p127 = pnand %p125, %p126
      %p128 = pneg %p127
      // Predicated region
      $region9: #{tpu_custom_call.1} parent=5 // pred_check
        _
      $region10: #{tpu_custom_call.1} parent=5 // pred_check_branch
        %130 = sbr.rel (%p127) target = $region12
      $region11: #{tpu_custom_call.1} parent=5 // pred_region
        %s131 = ssub.s32 %s14, 1
      $region12: #{tpu_custom_call.1} parent=5 // pred_fallthru
        _
      %p132 = scmp.lt.s32.totalorder %s14, 4
      // Predicated region
      $region13: #{tpu_custom_call.1} parent=5 // pred_check
        %p133 = pneg %p132
      $region14: #{tpu_custom_call.1} parent=5 // pred_check_branch
        %135 = sbr.rel (%p133) target = $region16
      $region15: #{tpu_custom_call.1} parent=5 // pred_region
        // Predicated region
        $region17: #{tpu_custom_call.1} parent=15 // pred_check
          %p136 = pneg %p57
        $region18: #{tpu_custom_call.1} parent=15 // pred_check_branch
          %138 = sbr.rel (%p136) target = $region20
        $region19: #{tpu_custom_call.1} parent=15 // pred_region
          %s139 = sand.u32 %s47, 1
          %s140 = scalar_lea.sflag [#allocation6], %s139
          %s141 = sand.u32 %s47, 1
          %s142 = smul.addr %s141, 4
          %s143 = scalar_lea.vmem [#allocation5], %s142
          %s145 = ssub.s32 64, 64
          %146 = vsyncadd %s140, %s145
          %s147 = smul.addr %s22, 2
          %s148 = sadd.s32 %s23, %s147
          %s149 = smul.addr %s21, 2
          %s150 = sadd.s32 %s148, %s149
          %s151 = smul.addr %s150, 64
          %s152 = scalar_lea.hbm %s0, %s151
          %s154 = sshll.u32 %s143, 4
          %s155 = int_to_ptr.vmem [resolvable:$true] %s154
          %157 = dma.hbm_to_vmem [thread:$0]  %s152, 64, %s155, %s140
        $region20: #{tpu_custom_call.1} parent=15 // pred_fallthru
          _
        // Predicated region
        $region21: #{tpu_custom_call.1} parent=15 // pred_check
          %p158 = pneg %p83
        $region22: #{tpu_custom_call.1} parent=15 // pred_check_branch
          %160 = sbr.rel (%p158) target = $region24
        $region23: #{tpu_custom_call.1} parent=15 // pred_region
          %s161 = sand.u32 %s73, 1
          %s162 = scalar_lea.sflag [#allocation8], %s161
          %s163 = sand.u32 %s73, 1
          %s164 = smul.addr %s163, 16
          %s165 = scalar_lea.vmem [#allocation7], %s164
          %s167 = ssub.s32 256, 256
          %168 = vsyncadd %s162, %s167
          %s169 = smul.addr %s21, 2
          %s170 = smul.addr %s169, 128
          %s171 = scalar_lea.hbm %s1, %s170
          %s173 = sshll.u32 %s165, 4
          %s174 = int_to_ptr.vmem [resolvable:$true] %s173
          %176 = dma.hbm_to_vmem [thread:$0]  %s171, 256, %s174, %s162
        $region24: #{tpu_custom_call.1} parent=15 // pred_fallthru
          _
      $region16: #{tpu_custom_call.1} parent=5 // pred_fallthru
        _
      %p177 = scmp.le.s32.totalorder 1, %s14
      %p178 = scmp.lt.s32.totalorder %s14, 5
      %p179 = pnand %p177, %p178
      %p180 = pneg %p179
      // Predicated region
      $region25: #{tpu_custom_call.1} parent=5 // pred_check
        _
      $region26: #{tpu_custom_call.1} parent=5 // pred_check_branch
        %182 = sbr.rel (%p179) target = $region28
      $region27: #{tpu_custom_call.1} parent=5 // pred_region
        %s183 = ssub.s32 %s14, 1
        %s184 = sand.u32 %s50, 1
        %s185 = scalar_lea.sflag [#allocation6], %s184
        %s186 = sand.u32 %s50, 1
        %s187 = smul.addr %s186, 4
        %s188 = scalar_lea.vmem [#allocation5], %s187
        // Predicated region
        $region29: #{tpu_custom_call.1} parent=27 // pred_check
          %p189 = pneg %p63
        $region30: #{tpu_custom_call.1} parent=27 // pred_check_branch
          %191 = sbr.rel (%p189) target = $region32
        $region31: #{tpu_custom_call.1} parent=27 // pred_region
          %192 = dma.done %s185, 64
        $region32: #{tpu_custom_call.1} parent=27 // pred_fallthru
          _
        %s193 = sand.u32 %s76, 1
        %s194 = scalar_lea.sflag [#allocation8], %s193
        %s195 = sand.u32 %s76, 1
        %s196 = smul.addr %s195, 16
        %s197 = scalar_lea.vmem [#allocation7], %s196
        // Predicated region
        $region33: #{tpu_custom_call.1} parent=27 // pred_check
          %p198 = pneg %p89
        $region34: #{tpu_custom_call.1} parent=27 // pred_check_branch
          %200 = sbr.rel (%p198) target = $region36
        $region35: #{tpu_custom_call.1} parent=27 // pred_region
          %201 = dma.done %s194, 256
        $region36: #{tpu_custom_call.1} parent=27 // pred_fallthru
          _
        %s202 = sand.u32 %s50, 1
        %s203 = scalar_lea.sflag [#allocation6], %s202
        %s204 = sand.u32 %s50, 1
        %s205 = smul.addr %s204, 4
        %s206 = scalar_lea.vmem [#allocation5], %s205
        %p207 = pneg %p63
        %p208 = pneg %p60
        %s209 = sand.u32 %s76, 1
        %s210 = scalar_lea.sflag [#allocation8], %s209
        %s211 = sand.u32 %s76, 1
        %s212 = smul.addr %s211, 16
        %s213 = scalar_lea.vmem [#allocation7], %s212
        %p214 = pneg %p89
        %p215 = pneg %p86
        %p216 = pneg %p117
        %p217 = pneg %p114
        %p218 = scmp.lt.s32.totalorder %s24, 1
        %s219 = scalar_select %p218, %s24, 1
        %p220 = scmp.lt.s32.totalorder %s25, 0
        %s221 = scalar_select %p220, %s25, 0
        %s222 = sadd.s32 %s221, %s219
        %s223 = smul.addr %s222, 8
        %s224 = scalar_lea.vmem %s2, %s223
        %p225 = scmp.lt.s32.totalorder %s24, 1
        %s226 = scalar_select %p225, %s24, 1
        %p227 = scmp.lt.s32.totalorder %s25, 0
        %s228 = scalar_select %p227, %s25, 0
        %s229 = sadd.s32 %s228, %s226
        %s230 = smul.addr %s229, 8
        %s231 = scalar_lea.vmem %s2, %s230
        %v232 = vld [vmem:[%s188] sm:$0xf]
        %p233 = scmp.eq.s32.totalorder %s26, 0
        // Predicated region
        $region37: #{tpu_custom_call.1} parent=27 // pred_check
          %p234 = pneg %p233
        $region38: #{tpu_custom_call.1} parent=27 // pred_check_branch
          %236 = sbr.rel (%p234) target = $region40
        $region39: #{tpu_custom_call.1} parent=27 // pred_region
          %v237 = vld [vmem:[%s197] sm:$0xff]
          %v238 = vld [vmem:[%s197 + $0x8] sm:$0xff]
          %v239 = vmax.f32 %v237, %v238
          %240 = vmax.xlane.f32.xlu0 %v239
          %v241 = vpop.xlane.xlu0 %240
          %vm242 = vcmask 7168
          %243 = vst.msk [vmem:[#allocation2] sm:$0xff] %vm242, %v241
          %244 = vst.msk [vmem:[#allocation3] sm:$0xff] %vm242, 0.0
          %vm245 = vcmask 31744
          %246 = vst.msk [vmem:[#allocation4] sm:$0xff] %vm245, 0.0
        $region40: #{tpu_custom_call.1} parent=27 // pred_fallthru
          _
        %s247 = smul.u32 %s26, 128
        %s248 = sshra.s32 %s247, 7
        %s249 = sand.u32 %s247, 127
        %s250 = smul.addr %s248, 8
        %s251 = scalar_lea.vmem %s197, %s250 [#allocation7]
        %v252 = vld [vmem:[%s251] sm:$0xff]
        %v253 = vld [vmem:[#allocation2] sm:$0xff]
        %255 = vset.pattern.permute.xlu0 0
        %256 = vperm.xlu0 %255, %v253
        %v257 = vpop.permute.xlu0 %256
        %v259 = vsub.f32 %v252, %v257
        %v260 = vmul.f32 %v259, 1.442695
        %v261 = vpow.pop %v260
        %v262 = vld [vmem:[#allocation3] sm:$0xff]
        %263 = vadd.xlane.f32.xlu0 %v261
        %v264 = vpop.xlane.xlu0 %263
        %v265 = vadd.f32 %v262, %v264
        %vm266 = vcmask 7168
        %267 = vst.msk [vmem:[#allocation3] sm:$0xff] %vm266, %v265
        %v268 = vld [vmem:[#allocation4] sm:$0xff]
        %269 = vmatprep.subr.mxu0 0.0
        %270 = vmatpush1.xpose.msra.mxu0 %v232
        %271 = vmatprep.subr.mxu0 0.0
        %272 = vmatpush1.xpose.msra.mxu0 0.0
        %273 = vmatprep.subr.mxu0 0.0
        %274 = vmatpush1.xpose.msra.mxu0 0.0
        %275 = vmatprep.subr.mxu0 0.0
        %276 = vmatpush1.xpose.msra.mxu0 0.0
        %277 = vmatprep.subr.mxu0 0.0
        %278 = vmatpush1.xpose.msra.mxu0 0.0
        %279 = vmatprep.subr.mxu0 0.0
        %280 = vmatpush1.xpose.msra.mxu0 0.0
        %281 = vmatprep.subr.mxu0 0.0
        %282 = vmatpush1.xpose.msra.mxu0 0.0
        %283 = vmatprep.subr.mxu0 0.0
        %284 = vmatpush1.xpose.msra.mxu0 0.0
        %285 = vmatprep.subr.mxu0 0.0
        %286 = vmatpush1.xpose.msra.mxu0 0.0
        %287 = vmatprep.subr.mxu0 0.0
        %288 = vmatpush1.xpose.msra.mxu0 0.0
        %289 = vmatprep.subr.mxu0 0.0
        %290 = vmatpush1.xpose.msra.mxu0 0.0
        %291 = vmatprep.subr.mxu0 0.0
        %292 = vmatpush1.xpose.msra.mxu0 0.0
        %293 = vmatprep.subr.mxu0 0.0
        %294 = vmatpush1.xpose.msra.mxu0 0.0
        %295 = vmatprep.subr.mxu0 0.0
        %296 = vmatpush1.xpose.msra.mxu0 0.0
        %297 = vmatprep.subr.mxu0 0.0
        %298 = vmatpush1.xpose.msra.mxu0 0.0
        %299 = vmatprep.subr.mxu0 0.0
        %300 = vmatpush1.xpose.msra.mxu0 0.0
        %301 = vmatprep.subr.mxu0 0.0
        %302 = vmatpush1.xpose.msra.mxu0 0.0
        %303 = vmatprep.subr.mxu0 0.0
        %304 = vmatpush1.xpose.msra.mxu0 0.0
        %305 = vmatprep.subr.mxu0 0.0
        %306 = vmatpush1.xpose.msra.mxu0 0.0
        %307 = vmatprep.subr.mxu0 0.0
        %308 = vmatpush1.xpose.msra.mxu0 0.0
        %309 = vmatprep.subr.mxu0 0.0
        %310 = vmatpush1.xpose.msra.mxu0 0.0
        %311 = vmatprep.subr.mxu0 0.0
        %312 = vmatpush1.xpose.msra.mxu0 0.0
        %313 = vmatprep.subr.mxu0 0.0
        %314 = vmatpush1.xpose.msra.mxu0 0.0
        %315 = vmatprep.subr.mxu0 0.0
        %316 = vmatpush1.xpose.msra.mxu0 0.0
        %317 = vmatprep.subr.mxu0 0.0
        %318 = vmatpush1.xpose.msra.mxu0 0.0
        %319 = vmatprep.subr.mxu0 0.0
        %320 = vmatpush1.xpose.msra.mxu0 0.0
        %321 = vmatprep.subr.mxu0 0.0
        %322 = vmatpush1.xpose.msra.mxu0 0.0
        %323 = vmatprep.subr.mxu0 0.0
        %324 = vmatpush1.xpose.msra.mxu0 0.0
        %325 = vmatprep.subr.mxu0 0.0
        %326 = vmatpush1.xpose.msra.mxu0 0.0
        %327 = vmatprep.subr.mxu0 0.0
        %328 = vmatpush1.xpose.msra.mxu0 0.0
        %329 = vmatprep.subr.mxu0 0.0
        %330 = vmatpush1.xpose.msra.mxu0 0.0
        %331 = vmatprep.subr.mxu0 0.0
        %332 = vmatpush1.xpose.msra.mxu0 0.0
        %333 = vmatprep.mubr.f32.mxu0 0.0
        %334 = vmatmul.mubr.f32.gmra.mrb[0].mxu0 %v261
        %v335 = vpop.f32.mrb[0].mxu0
        %v336 = vadd.f32 0.0, %v335
        %v337 = vpop.f32.mrb[0].mxu0
        %338 = vdwg.mxu0
        %v339 = vadd.f32 %v268, %v336
        %vm340 = vcmask 31744
        %341 = vst.msk [vmem:[#allocation4] sm:$0xff] %vm340, %v339
        %p342 = scmp.eq.s32.totalorder %s26, 1
        // Predicated region
        $region41: #{tpu_custom_call.1} parent=27 // pred_check
          %p343 = pneg %p342
        $region42: #{tpu_custom_call.1} parent=27 // pred_check_branch
          %345 = sbr.rel (%p343) target = $region44
        $region43: #{tpu_custom_call.1} parent=27 // pred_region
          %v346 = vld [vmem:[#allocation3] sm:$0xff]
          %v347 = vrcp.pop %v346
          %v348 = vld [vmem:[#allocation4] sm:$0xff]
          %350 = vset.pattern.permute.xlu0 0
          %351 = vperm.xlu0 %350, %v347
          %v352 = vpop.permute.xlu0 %351
          %v354 = vmul.f32 %v348, %v352
          %355 = vst.msk [vmem:[%s231] sm:$0xff] %vm340, %v354
        $region44: #{tpu_custom_call.1} parent=27 // pred_fallthru
          _
        %p356 = scmp.lt.s32.totalorder %s24, 1
        %s357 = scalar_select %p356, %s24, 1
        %p358 = scmp.lt.s32.totalorder %s25, 0
        %s359 = scalar_select %p358, %s25, 0
        %s360 = sadd.s32 %s359, %s357
        %s361 = smul.addr %s360, 8
        %s362 = scalar_lea.vmem %s2, %s361
        // Predicated region
        $region45: #{tpu_custom_call.1} parent=27 // pred_check
          %p363 = pneg %p114
        $region46: #{tpu_custom_call.1} parent=27 // pred_check_branch
          %365 = sbr.rel (%p363) target = $region48
        $region47: #{tpu_custom_call.1} parent=27 // pred_region
          _
        $region48: #{tpu_custom_call.1} parent=27 // pred_fallthru
          _
      $region28: #{tpu_custom_call.1} parent=5 // pred_fallthru
        _
      %p366 = scmp.le.s32.totalorder 2, %s14
      // Predicated region
      $region49: #{tpu_custom_call.1} parent=5 // pred_check
        %p367 = pneg %p366
      $region50: #{tpu_custom_call.1} parent=5 // pred_check_branch
        %369 = sbr.rel (%p367) target = $region52
      $region51: #{tpu_custom_call.1} parent=5 // pred_region
        %s370 = ssub.s32 %s14, 2
        // Predicated region
        $region53: #{tpu_custom_call.1} parent=51 // pred_check
          %p371 = pneg %p120
        $region54: #{tpu_custom_call.1} parent=51 // pred_check_branch
          %373 = sbr.rel (%p371) target = $region56
        $region55: #{tpu_custom_call.1} parent=51 // pred_region
          %p374 = scmp.lt.s32.totalorder %s27, 1
          %s375 = scalar_select %p374, %s27, 1
          %p376 = scmp.lt.s32.totalorder %s28, 0
          %s377 = scalar_select %p376, %s28, 0
          %s378 = sadd.s32 %s377, %s375
          %s379 = smul.addr %s378, 8
          %s380 = scalar_lea.vmem %s2, %s379
        $region56: #{tpu_custom_call.1} parent=51 // pred_fallthru
          _
      $region52: #{tpu_custom_call.1} parent=5 // pred_fallthru
        _
    $region6: #{tpu_custom_call.1} parent=1 // loop_footer
      %s18 = sadd.s32 1, %s14
    $region7: #{tpu_custom_call.1} parent=1 // loop_footer_branch
      %13 = sbr.rel target = $region3
    $region8: #{tpu_custom_call.1} parent=1 // loop_exit
      _
    %381 = vsyncpa [#allocation6], 1
    %s382 = scalar_lea.sflag [#allocation6], 1
    %383 = vsyncpa %s382, 1
    %384 = vsyncpa [#allocation8], 1
    %s385 = scalar_lea.sflag [#allocation8], 1
    %386 = vsyncpa %s385, 1

</llo_original>
